<compile_context>
chip_gen: v6e
topology: v6e:2x2x1
jax: 0.10.0
libtpu: 0.0.40
codegen_flags: <defaults>
</compile_context>

<pallas_src>
import functools

import numpy as np
import jax
import jax.numpy as jnp
from jax.experimental import pallas as pl
from jax.experimental.pallas import tpu as pltpu


def _round_up(x, m):
    return ((x + m - 1) // m) * m


# ------------------------------- kernel -------------------------------------


def _fused_segmentor_kernel(k_rows, p_ref, w1_ref, b1_ref, w2_ref, b2_ref,
                            kron_ref, o_ref):
    # p_ref    : (HfWf, Kc_pad)      bf16   one image's patch rows
    # w1_ref   : (Kc_pad, D_pad)     bf16   backbone conv (norm folded in)
    # b1_ref   : (1, D_pad)          f32
    # w2_ref   : (D_pad, K_pad)      bf16   head 1x1 conv
    # b2_ref   : (1, K_pad)          f32
    # kron_ref : (HfWf, out_hw_pad)  f32    kron(wh, ww)^T composed resize
    # o_ref    : (k_rows, out_hw_pad) f32   resized logits, class-major
    acc = jnp.dot(p_ref[...], w1_ref[...], preferred_element_type=jnp.float32)
    # bias + ReLU + bf16 cast fused in one epilogue expression (v5e VALU note)
    feats = jnp.maximum(acc + b1_ref[...], 0.0).astype(w2_ref.dtype)
    logits = jnp.dot(feats, w2_ref[...], preferred_element_type=jnp.float32)
    logits = logits + b2_ref[...]                      # (HfWf, K_pad) f32
    # classes to sublanes (padded classes are exactly zero, sliced off here)
    planes = jnp.transpose(logits)[:k_rows, :]         # (k_rows, HfWf) f32
    # composed (upsample x stride  o  postprocess-resize) as ONE f32 GEMM
    o_ref[...] = jnp.dot(planes, kron_ref[...],
                         preferred_element_type=jnp.float32)


# ------------------------------ wrapper --------------------------------------


def pallas_fused_semantic_segmentor(patches, w1, b1, w2, b2, kron, *, batch,
                                    k_rows):
    m_total, kc_pad = patches.shape            # m_total = B * Hf * Wf
    hfwf = m_total // batch
    d_pad = w1.shape[1]
    k_pad = w2.shape[1]
    out_hw_pad = kron.shape[1]
    kernel = functools.partial(_fused_segmentor_kernel, k_rows)
    return pl.pallas_call(
        kernel,
        out_shape=jax.ShapeDtypeStruct((batch * k_rows, out_hw_pad),
                                       jnp.float32),
        grid=(batch,),
        in_specs=[
            pl.BlockSpec((hfwf, kc_pad), lambda b: (b, 0)),
            pl.BlockSpec((kc_pad, d_pad), lambda b: (0, 0)),
            pl.BlockSpec((1, d_pad), lambda b: (0, 0)),
            pl.BlockSpec((d_pad, k_pad), lambda b: (0, 0)),
            pl.BlockSpec((1, k_pad), lambda b: (0, 0)),
            pl.BlockSpec((hfwf, out_hw_pad), lambda b: (0, 0)),
        ],
        out_specs=pl.BlockSpec((k_rows, out_hw_pad), lambda b: (b, 0)),
        compiler_params=pltpu.CompilerParams(
            dimension_semantics=("parallel",)),
    )(patches, w1, b1, w2, b2, kron)


# --------------------------- host-side helpers -------------------------------


def _interp_matrix_np(out_size, in_size):
    """PyTorch F.interpolate(mode='bilinear', align_corners=False) weights."""
    i = np.arange(out_size, dtype=np.float64)
    src = (i + 0.5) * (in_size / out_size) - 0.5
    src = np.clip(src, 0.0, in_size - 1)
    lo = np.floor(src).astype(np.int64)
    hi = np.minimum(lo + 1, in_size - 1)
    frac = src - lo
    w = np.zeros((out_size, in_size), dtype=np.float64)
    w[np.arange(out_size), lo] += 1.0 - frac
    w[np.arange(out_size), hi] += frac
    return w


# ----------------------------- forward pass ---------------------------------


def semantic_segmentor_forward(images, pixel_mean, pixel_std,
                               w_backbone, b_backbone, w_head, b_head,
                               stride, out_h, out_w):
    B, C, H, W = images.shape
    D = w_backbone.shape[0]
    K = w_head.shape[0]
    Hf, Wf = H // stride, W // stride
    HfWf = Hf * Wf
    Kc = C * stride * stride
    assert HfWf % 8 == 0, "per-image patch rows must tile sublanes"

    # ---- fold (x - mean) / std into the backbone conv (exact, conv is linear)
    inv_std = 1.0 / pixel_std                                      # (C,)
    w_norm = w_backbone * inv_std[None, :, None, None]             # (D,C,s,s)
    b_eff = b_backbone - jnp.einsum('dcij,c->d', w_backbone,
                                    pixel_mean * inv_std)          # (D,)

    # ---- lane-dense padded GEMM operands (D padded to 128 per review)
    kc_pad = _round_up(Kc, 128)
    d_pad = _round_up(D, 128)
    k_pad = _round_up(K, 128)
    k_rows = _round_up(K, 8)

    w1 = jnp.pad(w_norm.reshape(D, Kc).T.astype(jnp.bfloat16),
                 ((0, kc_pad - Kc), (0, d_pad - D)))               # (kc_pad,d_pad)
    b1 = jnp.pad(b_eff.reshape(1, D).astype(jnp.float32),
                 ((0, 0), (0, d_pad - D)))                         # (1,d_pad)
    w2 = jnp.pad(w_head.T.astype(jnp.bfloat16),
                 ((0, d_pad - D), (0, k_pad - K)))                 # (d_pad,k_pad)
    b2 = jnp.pad(b_head.reshape(1, K).astype(jnp.float32),
                 ((0, 0), (0, k_pad - K)))                         # (1,k_pad)

    # ---- compose head upsample (Hf->H, Wf->W) with postprocess resize
    #      (H->out_h, W->out_w) into one interpolation matrix per axis (exact
    #      linear-map composition), then into ONE Kronecker GEMM operator.
    #      Kept in f32 (review correctness note); cost is negligible.
    wh_np = _interp_matrix_np(out_h, H) @ _interp_matrix_np(H, Hf)   # (out_h,Hf)
    ww_np = _interp_matrix_np(out_w, W) @ _interp_matrix_np(W, Wf)   # (out_w,Wf)
    out_hw = out_h * out_w
    out_hw_pad = _round_up(out_hw, 128)
    kron_np = np.zeros((HfWf, out_hw_pad), dtype=np.float32)
    kron_np[:, :out_hw] = np.kron(wh_np, ww_np).T    # (Hf*Wf, out_h*out_w)
    kron = jnp.asarray(kron_np, jnp.float32)

    # ---- patchify: s x s stride-s conv as a GEMM over patch rows
    # TODO(synk): this patchify transpose remains an XLA-level relayout;
    # avoiding it requires a channel-last input layout end to end.
    patches = images.reshape(B, C, Hf, stride, Wf, stride)
    patches = patches.transpose(0, 2, 4, 1, 3, 5).reshape(B * HfWf, Kc)
    patches = jnp.pad(patches.astype(jnp.bfloat16),
                      ((0, 0), (0, kc_pad - Kc)))                  # (B*HfWf,kc_pad)

    # ---- single fused kernel: backbone GEMM+ReLU, head GEMM, composed resize
    out2d = pallas_fused_semantic_segmentor(patches, w1, b1, w2, b2, kron,
                                            batch=B, k_rows=k_rows)

    # sem_seg_postprocess crop is the identity here (no ImageList padding);
    # one final slice off the lane/class padding to the spec'd output shape.
    result = out2d.reshape(B, k_rows, out_hw_pad)[:, :K, :out_hw]
    return result.reshape(B, K, out_h, out_w)


# --------------------------------- main --------------------------------------


if __name__ == "__main__":
    key = jax.random.PRNGKey(0)
    B, C, H, W = 2, 3, 32, 32      # batched "image" tensors (C, H, W) each
    D = 32                         # backbone feature channels
    K = 8                          # num semantic classes
    stride = 4                     # backbone stride == head common_stride
    out_h, out_w = 40, 40          # requested per-image output height/width

    k_img, k_w1, k_b1, k_w2, k_b2 = jax.random.split(key, 5)
    images = jax.random.uniform(k_img, (B, C, H, W), jnp.float32, 0.0, 255.0)

    # detectron2 default pixel_mean / pixel_std buffers
    pixel_mean = jnp.array([103.530, 116.280, 123.675], jnp.float32)
    pixel_std = jnp.array([57.375, 57.120, 58.395], jnp.float32)

    # deterministic synthetic weights
    w_backbone = jax.random.normal(k_w1, (D, C, stride, stride), jnp.float32) * 0.05
    b_backbone = jax.random.normal(k_b1, (D,), jnp.float32) * 0.01
    w_head = jax.random.normal(k_w2, (K, D), jnp.float32) * 0.05
    b_head = jax.random.normal(k_b2, (K,), jnp.float32) * 0.01

    fwd = jax.jit(semantic_segmentor_forward,
                  static_argnames=("stride", "out_h", "out_w"))
    out = fwd(images, pixel_mean, pixel_std,
              w_backbone, b_backbone, w_head, b_head,
              stride=stride, out_h=out_h, out_w=out_w)
    jax.block_until_ready(out)
    assert out.shape == (B, K, out_h, out_w) and out.dtype == jnp.float32
    print("KERNEL_OK")
</pallas_src>

<mosaic_0001>
module attributes {stable_mosaic.version = 11 : i64} {
  func.func @_fused_segmentor_kernel(%arg0: i32, %arg1: memref<64x128xbf16, #tpu.memory_space<vmem>>, %arg2: memref<128x128xbf16, #tpu.memory_space<vmem>>, %arg3: memref<1x128xf32, #tpu.memory_space<vmem>>, %arg4: memref<128x128xbf16, #tpu.memory_space<vmem>>, %arg5: memref<1x128xf32, #tpu.memory_space<vmem>>, %arg6: memref<64x1664xf32, #tpu.memory_space<vmem>>, %arg7: memref<8x1664xf32, #tpu.memory_space<vmem>>) attributes {dimension_semantics = [#tpu.dimension_semantics<parallel>], iteration_bounds = array<i64: 2>, scalar_prefetch = 0 : i64, scratch_operands = 0 : i64, tpu.core_type = #tpu.core_type<tc>, window_params = [{transform_indices = @transform_0, window_bounds = array<i64: 64, 128>}, {pipeline_mode = #tpu.pipeline_mode<synchronous>, transform_indices = @transform_1, window_bounds = array<i64: 128, 128>}, {pipeline_mode = #tpu.pipeline_mode<synchronous>, transform_indices = @transform_2, window_bounds = array<i64: 1, 128>}, {pipeline_mode = #tpu.pipeline_mode<synchronous>, transform_indices = @transform_3, window_bounds = array<i64: 128, 128>}, {pipeline_mode = #tpu.pipeline_mode<synchronous>, transform_indices = @transform_4, window_bounds = array<i64: 1, 128>}, {pipeline_mode = #tpu.pipeline_mode<synchronous>, transform_indices = @transform_5, window_bounds = array<i64: 64, 1664>}, {transform_indices = @transform_6, window_bounds = array<i64: 8, 1664>}]} {
    %c0 = arith.constant 0 : index
    %c0_0 = arith.constant 0 : index
    %0 = vector.load %arg1[%c0, %c0_0] : memref<64x128xbf16, #tpu.memory_space<vmem>>, vector<64x128xbf16>
    %c0_1 = arith.constant 0 : index
    %c0_2 = arith.constant 0 : index
    %1 = vector.load %arg2[%c0_1, %c0_2] : memref<128x128xbf16, #tpu.memory_space<vmem>>, vector<128x128xbf16>
    %cst = arith.constant dense<0.000000e+00> : vector<64x128xf32>
    %2 = tpu.matmul %0, %1, %cst {dimension_numbers = #tpu.dot_dimension_numbers<[1], [0], [0], [1], [0, 0, 1, 1], [], []>} : vector<64x128xbf16>, vector<128x128xbf16>, vector<64x128xf32> -> vector<64x128xf32>
    %c0_3 = arith.constant 0 : index
    %c0_4 = arith.constant 0 : index
    %3 = vector.load %arg3[%c0_3, %c0_4] : memref<1x128xf32, #tpu.memory_space<vmem>>, vector<1x128xf32>
    %4 = vector.broadcast %3 : vector<1x128xf32> to vector<64x128xf32>
    %5 = arith.addf %2, %4 : vector<64x128xf32>
    %cst_5 = arith.constant 0.000000e+00 : f32
    %6 = vector.broadcast %cst_5 : f32 to vector<64x128xf32>
    %7 = arith.maximumf %5, %6 : vector<64x128xf32>
    %8 = arith.truncf %7 : vector<64x128xf32> to vector<64x128xbf16>
    %c0_6 = arith.constant 0 : index
    %c0_7 = arith.constant 0 : index
    %9 = vector.load %arg4[%c0_6, %c0_7] : memref<128x128xbf16, #tpu.memory_space<vmem>>, vector<128x128xbf16>
    %cst_8 = arith.constant dense<0.000000e+00> : vector<64x128xf32>
    %10 = tpu.matmul %8, %9, %cst_8 {dimension_numbers = #tpu.dot_dimension_numbers<[1], [0], [0], [1], [0, 0, 1, 1], [], []>} : vector<64x128xbf16>, vector<128x128xbf16>, vector<64x128xf32> -> vector<64x128xf32>
    %c0_9 = arith.constant 0 : index
    %c0_10 = arith.constant 0 : index
    %11 = vector.load %arg5[%c0_9, %c0_10] : memref<1x128xf32, #tpu.memory_space<vmem>>, vector<1x128xf32>
    %12 = vector.broadcast %11 : vector<1x128xf32> to vector<64x128xf32>
    %13 = arith.addf %10, %12 : vector<64x128xf32>
    %14 = tpu.transpose %13, [1, 0] : vector<64x128xf32> -> vector<128x64xf32>
    %15 = vector.extract_strided_slice %14 {offsets = [0, 0], sizes = [8, 64], strides = [1, 1]} : vector<128x64xf32> to vector<8x64xf32>
    %c0_11 = arith.constant 0 : index
    %c0_12 = arith.constant 0 : index
    %16 = vector.load %arg6[%c0_11, %c0_12] : memref<64x1664xf32, #tpu.memory_space<vmem>>, vector<64x1664xf32>
    %cst_13 = arith.constant dense<0.000000e+00> : vector<8x1664xf32>
    %17 = tpu.matmul %15, %16, %cst_13 {dimension_numbers = #tpu.dot_dimension_numbers<[1], [0], [0], [1], [0, 0, 1, 1], [], []>} : vector<8x64xf32>, vector<64x1664xf32>, vector<8x1664xf32> -> vector<8x1664xf32>
    %c0_14 = arith.constant 0 : index
    %c0_15 = arith.constant 0 : index
    %18 = vector.load %arg7[%c0_14, %c0_15] : memref<8x1664xf32, #tpu.memory_space<vmem>>, vector<8x1664xf32>
    tpu.vector_store %arg7[%c0_14, %c0_15], %17 {strides = array<i32>} : memref<8x1664xf32, #tpu.memory_space<vmem>>, vector<8x1664xf32>,
    return
  }
  func.func @transform_0(%arg0: i32) -> (i32, i32) {
    %c0_i32 = arith.constant 0 : i32
    %c0_i32_0 = arith.constant 0 : i32
    return %arg0, %c0_i32 : i32, i32
  }
  func.func @transform_1(%arg0: i32) -> (i32, i32) {
    %c0_i32 = arith.constant 0 : i32
    %c0_i32_0 = arith.constant 0 : i32
    %c0_i32_1 = arith.constant 0 : i32
    return %c0_i32, %c0_i32_0 : i32, i32
  }
  func.func @transform_2(%arg0: i32) -> (i32, i32) {
    %c0_i32 = arith.constant 0 : i32
    %c0_i32_0 = arith.constant 0 : i32
    %c0_i32_1 = arith.constant 0 : i32
    return %c0_i32, %c0_i32_0 : i32, i32
  }
  func.func @transform_3(%arg0: i32) -> (i32, i32) {
    %c0_i32 = arith.constant 0 : i32
    %c0_i32_0 = arith.constant 0 : i32
    %c0_i32_1 = arith.constant 0 : i32
    return %c0_i32, %c0_i32_0 : i32, i32
  }
  func.func @transform_4(%arg0: i32) -> (i32, i32) {
    %c0_i32 = arith.constant 0 : i32
    %c0_i32_0 = arith.constant 0 : i32
    %c0_i32_1 = arith.constant 0 : i32
    return %c0_i32, %c0_i32_0 : i32, i32
  }
  func.func @transform_5(%arg0: i32) -> (i32, i32) {
    %c0_i32 = arith.constant 0 : i32
    %c0_i32_0 = arith.constant 0 : i32
    %c0_i32_1 = arith.constant 0 : i32
    return %c0_i32, %c0_i32_0 : i32, i32
  }
  func.func @transform_6(%arg0: i32) -> (i32, i32) {
    %c0_i32 = arith.constant 0 : i32
    %c0_i32_0 = arith.constant 0 : i32
    return %arg0, %c0_i32 : i32, i32
  }
}

</mosaic_0001>

<llo_original>
// kernel: semantic_segmentor_forward.1
$region0: #{semantic_segmentor_forward.1}
  #allocation0 [shape = 'u32[]', space=smem, size = 0x4, offset = 0x4, fixed_abs, tag = 'smem constant byte address 0x4 - core index']
  #allocation1 [shape = 'u32[144,128]{1,0:T(1,128)}', space=vmem, size = 0x12000, scoped, tag = 'internal scratch']
  %s0 = inlined_call_operand.vmem [shape: bf16[128,128], index: 0, kind: input, shape index: {}]
  %s1 = inlined_call_operand.vmem [shape: bf16[128,128], index: 1, kind: input, shape index: {}]
  %s2 = inlined_call_operand.vmem [shape: f32[1,128], index: 2, kind: input, shape index: {}]
  %s3 = inlined_call_operand.vmem [shape: bf16[128,128], index: 3, kind: input, shape index: {}]
  %s4 = inlined_call_operand.vmem [shape: f32[1,128], index: 4, kind: input, shape index: {}]
  %s5 = inlined_call_operand.vmem [shape: f32[64,1664], index: 5, kind: input, shape index: {}]
  %s6 = inlined_call_operand.vmem [shape: f32[16,1664], index: 6, kind: output, shape index: {}]
  %s7 = sld [smem:[#allocation0]]
  $region57: #{semantic_segmentor_forward.1} parent=0
    _
  %s9 = ssub.s32 1, %s7
  %s10 = scalar_select 0, %s9, %s7
  loop: start=0, step=1, limit=4
  $region2: #{semantic_segmentor_forward.1} parent=0 // loop_pre_header
    _
  $region3: #{semantic_segmentor_forward.1} parent=0 // loop_header
    %s12 = sphi 0, %s16
    %p13 = scmp.ge.s32.totalorder %s12, 4
    %s22 = sphi 0, %s24
    %s25 = sphi 0, %s22
    %s26 = sphi 0, %s25
    %s42 = sphi 0, %s26
    %s46 = sphi 0, %s46
    %s48 = sphi 0, %s46
    %s49 = sphi 0, %s48
    %s63 = sphi 0, %s49
    %s67 = sphi 0, %s67
    %s69 = sphi 0, %s67
    %s70 = sphi 0, %s69
    %s84 = sphi 0, %s70
    %s88 = sphi 0, %s88
    %s90 = sphi 0, %s88
    %s91 = sphi 0, %s90
    %s105 = sphi 0, %s91
    %s109 = sphi 0, %s109
    %s111 = sphi 0, %s109
    %s112 = sphi 0, %s111
    %s126 = sphi 0, %s112
    %s130 = sphi 0, %s130
    %s132 = sphi 0, %s130
    %s133 = sphi 0, %s132
    %s147 = sphi 0, %s133
    %s153 = sphi 0, %s155
    %s156 = sphi 0, %s153
    %s157 = sphi 0, %s156
    %s173 = sphi 0, %s157
  $region4: #{semantic_segmentor_forward.1} parent=0 // loop_header_branch
    %15 = sbr.rel (%p13) target = $region8
  $region5: #{semantic_segmentor_forward.1} parent=0 // loop_body
    %s17 = ssub.s32 %s12, 1
    %s18 = ssub.s32 %s12, 2
    %s19 = sadd.s32 %s12, 1
    %s20 = ssub.s32 %s12, %s19
    %p21 = scmp.eq.s32.totalorder %s20, 0
    %s23 = sadd.s32 %s22, 1
    %s24 = scalar_select %p21, %s22, %s23
    %p27 = pneg %p21
    %p28 = scmp.eq.s32.totalorder %s12, 1
    %p29 = por %p27, %p28
    %p30 = scmp.ne.s32.totalorder %s22, %s25
    %p31 = scmp.eq.s32.totalorder %s12, 0
    %p32 = por %p30, %p31
    %p33 = scmp.ne.s32.totalorder %s22, %s25
    %p34 = scmp.eq.s32.totalorder %s17, 1
    %p35 = por %p33, %p34
    %p36 = scmp.ne.s32.totalorder %s25, %s26
    %p37 = scmp.eq.s32.totalorder %s17, 0
    %p38 = por %p36, %p37
    %p39 = scmp.ne.s32.totalorder %s25, %s26
    %p40 = scmp.eq.s32.totalorder %s18, 1
    %p41 = por %p39, %p40
    %p43 = scmp.ne.s32.totalorder %s26, %s42
    %p44 = scmp.eq.s32.totalorder %s18, 0
    %p45 = por %p43, %p44
    %s47 = sadd.s32 %s46, 1
    %p50 = scmp.eq.s32.totalorder %s12, 1
    %p51 = scmp.ne.s32.totalorder %s46, %s48
    %p52 = scmp.eq.s32.totalorder %s12, 0
    %p53 = por %p51, %p52
    %p54 = scmp.ne.s32.totalorder %s46, %s48
    %p55 = scmp.eq.s32.totalorder %s17, 1
    %p56 = por %p54, %p55
    %p57 = scmp.ne.s32.totalorder %s48, %s49
    %p58 = scmp.eq.s32.totalorder %s17, 0
    %p59 = por %p57, %p58
    %p60 = scmp.ne.s32.totalorder %s48, %s49
    %p61 = scmp.eq.s32.totalorder %s18, 1
    %p62 = por %p60, %p61
    %p64 = scmp.ne.s32.totalorder %s49, %s63
    %p65 = scmp.eq.s32.totalorder %s18, 0
    %p66 = por %p64, %p65
    %s68 = sadd.s32 %s67, 1
    %p71 = scmp.eq.s32.totalorder %s12, 1
    %p72 = scmp.ne.s32.totalorder %s67, %s69
    %p73 = scmp.eq.s32.totalorder %s12, 0
    %p74 = por %p72, %p73
    %p75 = scmp.ne.s32.totalorder %s67, %s69
    %p76 = scmp.eq.s32.totalorder %s17, 1
    %p77 = por %p75, %p76
    %p78 = scmp.ne.s32.totalorder %s69, %s70
    %p79 = scmp.eq.s32.totalorder %s17, 0
    %p80 = por %p78, %p79
    %p81 = scmp.ne.s32.totalorder %s69, %s70
    %p82 = scmp.eq.s32.totalorder %s18, 1
    %p83 = por %p81, %p82
    %p85 = scmp.ne.s32.totalorder %s70, %s84
    %p86 = scmp.eq.s32.totalorder %s18, 0
    %p87 = por %p85, %p86
    %s89 = sadd.s32 %s88, 1
    %p92 = scmp.eq.s32.totalorder %s12, 1
    %p93 = scmp.ne.s32.totalorder %s88, %s90
    %p94 = scmp.eq.s32.totalorder %s12, 0
    %p95 = por %p93, %p94
    %p96 = scmp.ne.s32.totalorder %s88, %s90
    %p97 = scmp.eq.s32.totalorder %s17, 1
    %p98 = por %p96, %p97
    %p99 = scmp.ne.s32.totalorder %s90, %s91
    %p100 = scmp.eq.s32.totalorder %s17, 0
    %p101 = por %p99, %p100
    %p102 = scmp.ne.s32.totalorder %s90, %s91
    %p103 = scmp.eq.s32.totalorder %s18, 1
    %p104 = por %p102, %p103
    %p106 = scmp.ne.s32.totalorder %s91, %s105
    %p107 = scmp.eq.s32.totalorder %s18, 0
    %p108 = por %p106, %p107
    %s110 = sadd.s32 %s109, 1
    %p113 = scmp.eq.s32.totalorder %s12, 1
    %p114 = scmp.ne.s32.totalorder %s109, %s111
    %p115 = scmp.eq.s32.totalorder %s12, 0
    %p116 = por %p114, %p115
    %p117 = scmp.ne.s32.totalorder %s109, %s111
    %p118 = scmp.eq.s32.totalorder %s17, 1
    %p119 = por %p117, %p118
    %p120 = scmp.ne.s32.totalorder %s111, %s112
    %p121 = scmp.eq.s32.totalorder %s17, 0
    %p122 = por %p120, %p121
    %p123 = scmp.ne.s32.totalorder %s111, %s112
    %p124 = scmp.eq.s32.totalorder %s18, 1
    %p125 = por %p123, %p124
    %p127 = scmp.ne.s32.totalorder %s112, %s126
    %p128 = scmp.eq.s32.totalorder %s18, 0
    %p129 = por %p127, %p128
    %s131 = sadd.s32 %s130, 1
    %p134 = scmp.eq.s32.totalorder %s12, 1
    %p135 = scmp.ne.s32.totalorder %s130, %s132
    %p136 = scmp.eq.s32.totalorder %s12, 0
    %p137 = por %p135, %p136
    %p138 = scmp.ne.s32.totalorder %s130, %s132
    %p139 = scmp.eq.s32.totalorder %s17, 1
    %p140 = por %p138, %p139
    %p141 = scmp.ne.s32.totalorder %s132, %s133
    %p142 = scmp.eq.s32.totalorder %s17, 0
    %p143 = por %p141, %p142
    %p144 = scmp.ne.s32.totalorder %s132, %s133
    %p145 = scmp.eq.s32.totalorder %s18, 1
    %p146 = por %p144, %p145
    %p148 = scmp.ne.s32.totalorder %s133, %s147
    %p149 = scmp.eq.s32.totalorder %s18, 0
    %p150 = por %p148, %p149
    %s151 = ssub.s32 %s12, %s19
    %p152 = scmp.eq.s32.totalorder %s151, 0
    %s154 = sadd.s32 %s153, 1
    %s155 = scalar_select %p152, %s153, %s154
    %p158 = pneg %p152
    %p159 = scmp.eq.s32.totalorder %s12, 1
    %p160 = por %p158, %p159
    %p161 = scmp.ne.s32.totalorder %s153, %s156
    %p162 = scmp.eq.s32.totalorder %s12, 0
    %p163 = por %p161, %p162
    %p164 = scmp.ne.s32.totalorder %s153, %s156
    %p165 = scmp.eq.s32.totalorder %s17, 1
    %p166 = por %p164, %p165
    %p167 = scmp.ne.s32.totalorder %s156, %s157
    %p168 = scmp.eq.s32.totalorder %s17, 0
    %p169 = por %p167, %p168
    %p170 = scmp.ne.s32.totalorder %s156, %s157
    %p171 = scmp.eq.s32.totalorder %s18, 1
    %p172 = por %p170, %p171
    %p174 = scmp.ne.s32.totalorder %s157, %s173
    %p175 = scmp.eq.s32.totalorder %s18, 0
    %p176 = por %p174, %p175
    %p177 = scmp.le.s32.totalorder 1, %s12
    %p178 = scmp.lt.s32.totalorder %s12, 3
    %p179 = pnand %p177, %p178
    %p180 = pneg %p179
    // Predicated region
    $region9: #{semantic_segmentor_forward.1} parent=5 // pred_check
      _
    $region10: #{semantic_segmentor_forward.1} parent=5 // pred_check_branch
      %182 = sbr.rel (%p179) target = $region12
    $region11: #{semantic_segmentor_forward.1} parent=5 // pred_region
      %s183 = ssub.s32 %s12, 1
      // Predicated region
      $region13: #{semantic_segmentor_forward.1} parent=11 // pred_check
        %p184 = pneg %p59
      $region14: #{semantic_segmentor_forward.1} parent=11 // pred_check_branch
        %186 = sbr.rel (%p184) target = $region16
      $region15: #{semantic_segmentor_forward.1} parent=11 // pred_region
        _
      $region16: #{semantic_segmentor_forward.1} parent=11 // pred_fallthru
        _
      // Predicated region
      $region17: #{semantic_segmentor_forward.1} parent=11 // pred_check
        %p187 = pneg %p80
      $region18: #{semantic_segmentor_forward.1} parent=11 // pred_check_branch
        %189 = sbr.rel (%p187) target = $region20
      $region19: #{semantic_segmentor_forward.1} parent=11 // pred_region
        _
      $region20: #{semantic_segmentor_forward.1} parent=11 // pred_fallthru
        _
      // Predicated region
      $region21: #{semantic_segmentor_forward.1} parent=11 // pred_check
        %p190 = pneg %p101
      $region22: #{semantic_segmentor_forward.1} parent=11 // pred_check_branch
        %192 = sbr.rel (%p190) target = $region24
      $region23: #{semantic_segmentor_forward.1} parent=11 // pred_region
        _
      $region24: #{semantic_segmentor_forward.1} parent=11 // pred_fallthru
        _
      // Predicated region
      $region25: #{semantic_segmentor_forward.1} parent=11 // pred_check
        %p193 = pneg %p122
      $region26: #{semantic_segmentor_forward.1} parent=11 // pred_check_branch
        %195 = sbr.rel (%p193) target = $region28
      $region27: #{semantic_segmentor_forward.1} parent=11 // pred_region
        _
      $region28: #{semantic_segmentor_forward.1} parent=11 // pred_fallthru
        _
      // Predicated region
      $region29: #{semantic_segmentor_forward.1} parent=11 // pred_check
        %p196 = pneg %p143
      $region30: #{semantic_segmentor_forward.1} parent=11 // pred_check_branch
        %198 = sbr.rel (%p196) target = $region32
      $region31: #{semantic_segmentor_forward.1} parent=11 // pred_region
        _
      $region32: #{semantic_segmentor_forward.1} parent=11 // pred_fallthru
        _
    $region12: #{semantic_segmentor_forward.1} parent=5 // pred_fallthru
      _
    %p199 = scmp.lt.s32.totalorder %s12, 2
    // Predicated region
    $region33: #{semantic_segmentor_forward.1} parent=5 // pred_check
      %p200 = pneg %p199
    $region34: #{semantic_segmentor_forward.1} parent=5 // pred_check_branch
      %202 = sbr.rel (%p200) target = $region36
    $region35: #{semantic_segmentor_forward.1} parent=5 // pred_region
      // Predicated region
      $region37: #{semantic_segmentor_forward.1} parent=35 // pred_check
        %p203 = pneg %p32
      $region38: #{semantic_segmentor_forward.1} parent=35 // pred_check_branch
        %205 = sbr.rel (%p203) target = $region40
      $region39: #{semantic_segmentor_forward.1} parent=35 // pred_region
        %s206 = smul.u32 8, %s12
        %p207 = scmp.lt.s32.totalorder %s206, 15
        %s208 = scalar_select %p207, %s206, 15
        %s209 = smul.addr %s208, 4
        %s210 = scalar_lea.vmem %s0, %s209
        %s211 = smul.u32 8, %s12
      $region40: #{semantic_segmentor_forward.1} parent=35 // pred_fallthru
        _
    $region36: #{semantic_segmentor_forward.1} parent=5 // pred_fallthru
      _
    %p212 = scmp.le.s32.totalorder 1, %s12
    %p213 = scmp.lt.s32.totalorder %s12, 3
    %p214 = pnand %p212, %p213
    %p215 = pneg %p214
    // Predicated region
    $region41: #{semantic_segmentor_forward.1} parent=5 // pred_check
      _
    $region42: #{semantic_segmentor_forward.1} parent=5 // pred_check_branch
      %217 = sbr.rel (%p214) target = $region44
    $region43: #{semantic_segmentor_forward.1} parent=5 // pred_region
      %s218 = ssub.s32 %s12, 1
      %s219 = smul.u32 8, %s17
      %p220 = scmp.lt.s32.totalorder %s219, 15
      %s221 = scalar_select %p220, %s219, 15
      %s222 = smul.addr %s221, 4
      %s223 = scalar_lea.vmem %s0, %s222
      %p224 = pneg %p38
      %p225 = pneg %p35
      %p226 = pneg %p59
      %p227 = pneg %p56
      %p228 = pneg %p80
      %p229 = pneg %p77
      %p230 = pneg %p101
      %p231 = pneg %p98
      %p232 = pneg %p122
      %p233 = pneg %p119
      %p234 = pneg %p143
      %p235 = pneg %p140
      %p236 = pneg %p169
      %p237 = pneg %p166
      %p238 = scmp.lt.s32.totalorder %s17, 1
      %s239 = scalar_select %p238, %s17, 1
      %s240 = smul.addr %s239, 13
      %s241 = smul.addr %s240, 8
      %s242 = scalar_lea.vmem %s6, %s241
      %s243 = smul.u32 8, %s17
      %p244 = scmp.lt.s32.totalorder %s243, 15
      %s245 = scalar_select %p244, %s243, 15
      %s246 = smul.addr %s245, 4
      %s247 = scalar_lea.vmem %s0, %s246
      %s248 = smul.u32 8, %s17
      %p249 = scmp.lt.s32.totalorder %s17, 1
      %s250 = scalar_select %p249, %s17, 1
      %s251 = smul.addr %s250, 13
      %s252 = smul.addr %s251, 8
      %s253 = scalar_lea.vmem %s6, %s252
      %v255 = vld [vmem:[%s247] sm:$0xf]
      %v256 = vld [vmem:[%s247 + $0x4] sm:$0xf]
      %v257 = vld [vmem:[%s247 + $0x8] sm:$0xf]
      %v258 = vld [vmem:[%s247 + $0xc] sm:$0xf]
      %v259 = vld [vmem:[%s247 + $0x10] sm:$0xf]
      %v260 = vld [vmem:[%s247 + $0x14] sm:$0xf]
      %v261 = vld [vmem:[%s247 + $0x18] sm:$0xf]
      %v262 = vld [vmem:[%s247 + $0x1c] sm:$0xf]
      %v263 = vld [vmem:[%s1] sm:$0xf]
      %v264 = vld [vmem:[%s1 + $0x4] sm:$0xf]
      %v265 = vld [vmem:[%s1 + $0x8] sm:$0xf]
      %v266 = vld [vmem:[%s1 + $0xc] sm:$0xf]
      %v267 = vld [vmem:[%s1 + $0x10] sm:$0xf]
      %v268 = vld [vmem:[%s1 + $0x14] sm:$0xf]
      %v269 = vld [vmem:[%s1 + $0x18] sm:$0xf]
      %v270 = vld [vmem:[%s1 + $0x1c] sm:$0xf]
      %v271 = vld [vmem:[%s1 + $0x20] sm:$0xf]
      %v272 = vld [vmem:[%s1 + $0x24] sm:$0xf]
      %v273 = vld [vmem:[%s1 + $0x28] sm:$0xf]
      %v274 = vld [vmem:[%s1 + $0x2c] sm:$0xf]
      %v275 = vld [vmem:[%s1 + $0x30] sm:$0xf]
      %v276 = vld [vmem:[%s1 + $0x34] sm:$0xf]
      %v277 = vld [vmem:[%s1 + $0x38] sm:$0xf]
      %v278 = vld [vmem:[%s1 + $0x3c] sm:$0xf]
      %v279 = vld [vmem:[%s2] sm:$0x1]
      %v281 = vlaneseq
      %v282 = vshrl.u32 %v281, 7
      %v283 = vsub.s32 0, %v282
      %v284 = vrot.slane %v279, %v283
      %v294 = vunpack.c.l.b16 %v255
      %v295 = vunpack.c.l.b16 %v256
      %v296 = vunpack.c.l.b16 %v257
      %v297 = vunpack.c.l.b16 %v258
      %v298 = vunpack.c.l.b16 %v259
      %v299 = vunpack.c.l.b16 %v260
      %v300 = vunpack.c.l.b16 %v261
      %v301 = vunpack.c.l.b16 %v262
      %v302 = vpack.c.b16 %v295, %v294
      %v303 = vpack.c.b16 %v297, %v296
      %v304 = vpack.c.b16 %v299, %v298
      %v305 = vpack.c.b16 %v301, %v300
      %v326 = vunpack.c.l.b16 %v263
      %v327 = vunpack.c.l.b16 %v264
      %v328 = vunpack.c.l.b16 %v265
      %v329 = vunpack.c.l.b16 %v266
      %v330 = vunpack.c.l.b16 %v267
      %v331 = vunpack.c.l.b16 %v268
      %v332 = vunpack.c.l.b16 %v269
      %v333 = vunpack.c.l.b16 %v270
      %v334 = vunpack.c.l.b16 %v271
      %v335 = vunpack.c.l.b16 %v272
      %v336 = vunpack.c.l.b16 %v273
      %v337 = vunpack.c.l.b16 %v274
      %v338 = vunpack.c.l.b16 %v275
      %v339 = vunpack.c.l.b16 %v276
      %v340 = vunpack.c.l.b16 %v277
      %v341 = vunpack.c.l.b16 %v278
      %v342 = vpack.c.b16 %v327, %v326
      %v343 = vpack.c.b16 %v329, %v328
      %v344 = vpack.c.b16 %v331, %v330
      %v345 = vpack.c.b16 %v333, %v332
      %v346 = vpack.c.b16 %v335, %v334
      %v347 = vpack.c.b16 %v337, %v336
      %v348 = vpack.c.b16 %v339, %v338
      %v349 = vpack.c.b16 %v341, %v340
      %358 = vmatprep.subr.bf16.mxu0 0
      %359 = vmatpush1.bf16.msra.mxu0 %v349
      %360 = vmatprep.subr.bf16.mxu0 0
      %361 = vmatpush1.bf16.msra.mxu0 %v348
      %362 = vmatprep.subr.bf16.mxu0 0
      %363 = vmatpush1.bf16.msra.mxu0 %v347
      %364 = vmatprep.subr.bf16.mxu0 0
      %365 = vmatpush1.bf16.msra.mxu0 %v346
      %366 = vmatprep.subr.bf16.mxu0 0
      %367 = vmatpush1.bf16.msra.mxu0 %v345
      %368 = vmatprep.subr.bf16.mxu0 0
      %369 = vmatpush1.bf16.msra.mxu0 %v344
      %370 = vmatprep.subr.bf16.mxu0 0
      %371 = vmatpush1.bf16.msra.mxu0 %v343
      %372 = vmatprep.subr.bf16.mxu0 0
      %373 = vmatpush1.bf16.msra.mxu0 %v342
      %374 = vmatprep.subr.bf16.mxu0 0
      %375 = vmatpush2.bf16.msra.mxu0 0
      %376 = vmatprep.subr.bf16.mxu0 0
      %377 = vmatpush2.bf16.msra.mxu0 0
      %378 = vmatprep.subr.bf16.mxu0 0
      %379 = vmatpush2.bf16.msra.mxu0 0
      %380 = vmatprep.subr.bf16.mxu0 0
      %381 = vmatpush2.bf16.msra.mxu0 0
      %382 = vmatprep.subr.bf16.mxu0 0
      %383 = vmatpush2.bf16.msra.mxu0 0
      %384 = vmatprep.subr.bf16.mxu0 0
      %385 = vmatpush2.bf16.msra.mxu0 0
      %386 = vmatprep.subr.bf16.mxu0 0
      %387 = vmatpush2.bf16.msra.mxu0 0
      %388 = vmatprep.subr.bf16.mxu0 0
      %389 = vmatpush2.bf16.msra.mxu0 0
      %390 = vmatprep.mubr.bf16.mxu0 0
      %391 = vmatmul.mubr.bf16.gmra.mxu0 %v302
      %v392 = vpop.f32.mrf.mxu0
      %v393 = vadd.f32 %v284, %v392
      %v394 = vpop.f32.mrf.mxu0
      %v395 = vpop.f32.mrf.mxu0
      %v396 = vadd.f32 %v284, %v395
      %v397 = vpop.f32.mrf.mxu0
      %398 = vmatprep.mubr.bf16.mxu0 0
      %399 = vmatmul.mubr.bf16.gmra.mxu0 %v303
      %v400 = vpop.f32.mrf.mxu0
      %v401 = vadd.f32 %v284, %v400
      %v402 = vpop.f32.mrf.mxu0
      %v403 = vpop.f32.mrf.mxu0
      %v404 = vadd.f32 %v284, %v403
      %v405 = vpop.f32.mrf.mxu0
      %406 = vmatprep.mubr.bf16.mxu0 0
      %407 = vmatmul.mubr.bf16.gmra.mxu0 %v304
      %v408 = vpop.f32.mrf.mxu0
      %v409 = vadd.f32 %v284, %v408
      %v410 = vpop.f32.mrf.mxu0
      %v411 = vpop.f32.mrf.mxu0
      %v412 = vadd.f32 %v284, %v411
      %v413 = vpop.f32.mrf.mxu0
      %414 = vmatprep.mubr.bf16.mxu0 0
      %415 = vmatmul.mubr.bf16.gmra.mxu0 %v305
      %v416 = vpop.f32.mrf.mxu0
      %v417 = vadd.f32 %v284, %v416
      %v418 = vpop.f32.mrf.mxu0
      %v419 = vpop.f32.mrf.mxu0
      %v420 = vadd.f32 %v284, %v419
      %v421 = vpop.f32.mrf.mxu0
      %422 = vdwg.mxu0
      %v423 = vmax.f32 %v393, 0.0
      %v424 = vmax.f32 %v396, 0.0
      %v425 = vmax.f32 %v401, 0.0
      %v426 = vmax.f32 %v404, 0.0
      %v427 = vmax.f32 %v409, 0.0
      %v428 = vmax.f32 %v412, 0.0
      %v429 = vmax.f32 %v417, 0.0
      %v430 = vmax.f32 %v420, 0.0
      %v431 = vpack.c.bf16 %v424, %v423
      %v432 = vpack.c.bf16 %v426, %v425
      %v433 = vpack.c.bf16 %v428, %v427
      %v434 = vpack.c.bf16 %v430, %v429
      %v435 = vld [vmem:[%s3] sm:$0xf]
      %v436 = vld [vmem:[%s3 + $0x4] sm:$0xf]
      %v437 = vld [vmem:[%s3 + $0x8] sm:$0xf]
      %v438 = vld [vmem:[%s3 + $0xc] sm:$0xf]
      %v439 = vld [vmem:[%s3 + $0x10] sm:$0xf]
      %v440 = vld [vmem:[%s3 + $0x14] sm:$0xf]
      %v441 = vld [vmem:[%s3 + $0x18] sm:$0xf]
      %v442 = vld [vmem:[%s3 + $0x1c] sm:$0xf]
      %v443 = vld [vmem:[%s3 + $0x20] sm:$0xf]
      %v444 = vld [vmem:[%s3 + $0x24] sm:$0xf]
      %v445 = vld [vmem:[%s3 + $0x28] sm:$0xf]
      %v446 = vld [vmem:[%s3 + $0x2c] sm:$0xf]
      %v447 = vld [vmem:[%s3 + $0x30] sm:$0xf]
      %v448 = vld [vmem:[%s3 + $0x34] sm:$0xf]
      %v449 = vld [vmem:[%s3 + $0x38] sm:$0xf]
      %v450 = vld [vmem:[%s3 + $0x3c] sm:$0xf]
      %v451 = vld [vmem:[%s4] sm:$0x1]
      %v453 = vlaneseq
      %v454 = vshrl.u32 %v453, 7
      %v455 = vsub.s32 0, %v454
      %v456 = vrot.slane %v451, %v455
      %v474 = vunpack.c.l.b16 %v435
      %v475 = vunpack.c.l.b16 %v436
      %v476 = vunpack.c.l.b16 %v437
      %v477 = vunpack.c.l.b16 %v438
      %v478 = vunpack.c.l.b16 %v439
      %v479 = vunpack.c.l.b16 %v440
      %v480 = vunpack.c.l.b16 %v441
      %v481 = vunpack.c.l.b16 %v442
      %v482 = vunpack.c.l.b16 %v443
      %v483 = vunpack.c.l.b16 %v444
      %v484 = vunpack.c.l.b16 %v445
      %v485 = vunpack.c.l.b16 %v446
      %v486 = vunpack.c.l.b16 %v447
      %v487 = vunpack.c.l.b16 %v448
      %v488 = vunpack.c.l.b16 %v449
      %v489 = vunpack.c.l.b16 %v450
      %v490 = vpack.c.b16 %v475, %v474
      %v491 = vpack.c.b16 %v477, %v476
      %v492 = vpack.c.b16 %v479, %v478
      %v493 = vpack.c.b16 %v481, %v480
      %v494 = vpack.c.b16 %v483, %v482
      %v495 = vpack.c.b16 %v485, %v484
      %v496 = vpack.c.b16 %v487, %v486
      %v497 = vpack.c.b16 %v489, %v488
      %506 = vmatprep.subr.bf16.mxu0 0
      %507 = vmatpush1.bf16.msra.mxu0 %v497
      %508 = vmatprep.subr.bf16.mxu0 0
      %509 = vmatpush1.bf16.msra.mxu0 %v496
      %510 = vmatprep.subr.bf16.mxu0 0
      %511 = vmatpush1.bf16.msra.mxu0 %v495
      %512 = vmatprep.subr.bf16.mxu0 0
      %513 = vmatpush1.bf16.msra.mxu0 %v494
      %514 = vmatprep.subr.bf16.mxu0 0
      %515 = vmatpush1.bf16.msra.mxu0 %v493
      %516 = vmatprep.subr.bf16.mxu0 0
      %517 = vmatpush1.bf16.msra.mxu0 %v492
      %518 = vmatprep.subr.bf16.mxu0 0
      %519 = vmatpush1.bf16.msra.mxu0 %v491
      %520 = vmatprep.subr.bf16.mxu0 0
      %521 = vmatpush1.bf16.msra.mxu0 %v490
      %522 = vmatprep.subr.bf16.mxu0 0
      %523 = vmatpush2.bf16.msra.mxu0 0
      %524 = vmatprep.subr.bf16.mxu0 0
      %525 = vmatpush2.bf16.msra.mxu0 0
      %526 = vmatprep.subr.bf16.mxu0 0
      %527 = vmatpush2.bf16.msra.mxu0 0
      %528 = vmatprep.subr.bf16.mxu0 0
      %529 = vmatpush2.bf16.msra.mxu0 0
      %530 = vmatprep.subr.bf16.mxu0 0
      %531 = vmatpush2.bf16.msra.mxu0 0
      %532 = vmatprep.subr.bf16.mxu0 0
      %533 = vmatpush2.bf16.msra.mxu0 0
      %534 = vmatprep.subr.bf16.mxu0 0
      %535 = vmatpush2.bf16.msra.mxu0 0
      %536 = vmatprep.subr.bf16.mxu0 0
      %537 = vmatpush2.bf16.msra.mxu0 0
      %538 = vmatprep.mubr.bf16.mxu0 0
      %539 = vmatmul.mubr.bf16.gmra.mxu0 %v431
      %v540 = vpop.f32.mrf.mxu0
      %v541 = vadd.f32 %v456, %v540
      %v542 = vpop.f32.mrf.mxu0
      %v543 = vpop.f32.mrf.mxu0
      %v544 = vadd.f32 %v456, %v543
      %v545 = vpop.f32.mrf.mxu0
      %546 = vmatprep.mubr.bf16.mxu0 0
      %547 = vmatmul.mubr.bf16.gmra.mxu0 %v432
      %v548 = vpop.f32.mrf.mxu0
      %v549 = vadd.f32 %v456, %v548
      %v550 = vpop.f32.mrf.mxu0
      %v551 = vpop.f32.mrf.mxu0
      %v552 = vadd.f32 %v456, %v551
      %v553 = vpop.f32.mrf.mxu0
      %554 = vmatprep.mubr.bf16.mxu0 0
      %555 = vmatmul.mubr.bf16.gmra.mxu0 %v433
      %v556 = vpop.f32.mrf.mxu0
      %v557 = vadd.f32 %v456, %v556
      %v558 = vpop.f32.mrf.mxu0
      %v559 = vpop.f32.mrf.mxu0
      %v560 = vadd.f32 %v456, %v559
      %v561 = vpop.f32.mrf.mxu0
      %562 = vmatprep.mubr.bf16.mxu0 0
      %563 = vmatmul.mubr.bf16.gmra.mxu0 %v434
      %v564 = vpop.f32.mrf.mxu0
      %v565 = vadd.f32 %v456, %v564
      %v566 = vpop.f32.mrf.mxu0
      %v567 = vpop.f32.mrf.mxu0
      %v568 = vadd.f32 %v456, %v567
      %v569 = vpop.f32.mrf.mxu0
      %570 = vdwg.mxu0
      %571 = vxpose.xlu0.b32.start [1/16] %v541, 128
      %572 = vxpose.xlu0.b32.cont [2/16] %v544, 128
      %573 = vxpose.xlu0.b32.cont [3/16] %v549, 128
      %574 = vxpose.xlu0.b32.cont [4/16] %v552, 128
      %575 = vxpose.xlu0.b32.cont [5/16] %v557, 128
      %576 = vxpose.xlu0.b32.cont [6/16] %v560, 128
      %577 = vxpose.xlu0.b32.cont [7/16] %v565, 128
      %578 = vxpose.xlu0.b32.cont [8/16] %v568, 128
      %579 = vxpose.xlu0.b32.cont [9/16] 0.0, 128
      %580 = vxpose.xlu0.b32.cont [10/16] 0.0, 128
      %581 = vxpose.xlu0.b32.cont [11/16] 0.0, 128
      %582 = vxpose.xlu0.b32.cont [12/16] 0.0, 128
      %583 = vxpose.xlu0.b32.cont [13/16] 0.0, 128
      %584 = vxpose.xlu0.b32.cont [14/16] 0.0, 128
      %585 = vxpose.xlu0.b32.cont [15/16] 0.0, 128
      %586 = vxpose.xlu0.b32.end [16/16] 0.0, 128
      %v587 = vpop.trf.xlu0
      %v588 = vpop.trf.xlu0
      %v589 = vpop.trf.xlu0
      %v590 = vpop.trf.xlu0
      %v591 = vpop.trf.xlu0
      %v592 = vpop.trf.xlu0
      %v593 = vpop.trf.xlu0
      %v594 = vpop.trf.xlu0
      %v595 = vpop.trf.xlu0
      %v596 = vpop.trf.xlu0
      %v597 = vpop.trf.xlu0
      %v598 = vpop.trf.xlu0
      %v599 = vpop.trf.xlu0
      %v600 = vpop.trf.xlu0
      %v601 = vpop.trf.xlu0
      %v602 = vpop.trf.xlu0
      %v603 = vld [vmem:[%s5] sm:$0xff]
      %v604 = vld [vmem:[%s5 + $0x8] sm:$0xff]
      %v605 = vld [vmem:[%s5 + $0x10] sm:$0xff]
      %v606 = vld [vmem:[%s5 + $0x18] sm:$0xff]
      %v607 = vld [vmem:[%s5 + $0x20] sm:$0xff]
      %v608 = vld [vmem:[%s5 + $0x28] sm:$0xff]
      %v609 = vld [vmem:[%s5 + $0x30] sm:$0xff]
      %v610 = vld [vmem:[%s5 + $0x38] sm:$0xff]
      %v611 = vld [vmem:[%s5 + $0x40] sm:$0xff]
      %v612 = vld [vmem:[%s5 + $0x48] sm:$0xff]
      %v613 = vld [vmem:[%s5 + $0x50] sm:$0xff]
      %v614 = vld [vmem:[%s5 + $0x58] sm:$0xff]
      %v615 = vld [vmem:[%s5 + $0x60] sm:$0xff]
      %v616 = vld [vmem:[%s5 + $0x68] sm:$0xff]
      %v617 = vld [vmem:[%s5 + $0x70] sm:$0xff]
      %v618 = vld [vmem:[%s5 + $0x78] sm:$0xff]
      %v619 = vld [vmem:[%s5 + $0x80] sm:$0xff]
      %v620 = vld [vmem:[%s5 + $0x88] sm:$0xff]
      %v621 = vld [vmem:[%s5 + $0x90] sm:$0xff]
      %v622 = vld [vmem:[%s5 + $0x98] sm:$0xff]
      %v623 = vld [vmem:[%s5 + $0xa0] sm:$0xff]
      %v624 = vld [vmem:[%s5 + $0xa8] sm:$0xff]
      %v625 = vld [vmem:[%s5 + $0xb0] sm:$0xff]
      %v626 = vld [vmem:[%s5 + $0xb8] sm:$0xff]
      %v627 = vld [vmem:[%s5 + $0xc0] sm:$0xff]
      %v628 = vld [vmem:[%s5 + $0xc8] sm:$0xff]
      %v629 = vld [vmem:[%s5 + $0xd0] sm:$0xff]
      %v630 = vld [vmem:[%s5 + $0xd8] sm:$0xff]
      %v631 = vld [vmem:[%s5 + $0xe0] sm:$0xff]
      %v632 = vld [vmem:[%s5 + $0xe8] sm:$0xff]
      %v633 = vld [vmem:[%s5 + $0xf0] sm:$0xff]
      %v634 = vld [vmem:[%s5 + $0xf8] sm:$0xff]
      %v635 = vld [vmem:[%s5 + $0x100] sm:$0xff]
      %v636 = vld [vmem:[%s5 + $0x108] sm:$0xff]
      %v637 = vld [vmem:[%s5 + $0x110] sm:$0xff]
      %v638 = vld [vmem:[%s5 + $0x118] sm:$0xff]
      %v639 = vld [vmem:[%s5 + $0x120] sm:$0xff]
      %v640 = vld [vmem:[%s5 + $0x128] sm:$0xff]
      %v641 = vld [vmem:[%s5 + $0x130] sm:$0xff]
      %v642 = vld [vmem:[%s5 + $0x138] sm:$0xff]
      %v643 = vld [vmem:[%s5 + $0x140] sm:$0xff]
      %v644 = vld [vmem:[%s5 + $0x148] sm:$0xff]
      %v645 = vld [vmem:[%s5 + $0x150] sm:$0xff]
      %v646 = vld [vmem:[%s5 + $0x158] sm:$0xff]
      %v647 = vld [vmem:[%s5 + $0x160] sm:$0xff]
      %v648 = vld [vmem:[%s5 + $0x168] sm:$0xff]
      %v649 = vld [vmem:[%s5 + $0x170] sm:$0xff]
      %v650 = vld [vmem:[%s5 + $0x178] sm:$0xff]
      %v651 = vld [vmem:[%s5 + $0x180] sm:$0xff]
      %v652 = vld [vmem:[%s5 + $0x188] sm:$0xff]
      %v653 = vld [vmem:[%s5 + $0x190] sm:$0xff]
      %v654 = vld [vmem:[%s5 + $0x198] sm:$0xff]
      %v655 = vld [vmem:[%s5 + $0x1a0] sm:$0xff]
      %v656 = vld [vmem:[%s5 + $0x1a8] sm:$0xff]
      %v657 = vld [vmem:[%s5 + $0x1b0] sm:$0xff]
      %v658 = vld [vmem:[%s5 + $0x1b8] sm:$0xff]
      %v659 = vld [vmem:[%s5 + $0x1c0] sm:$0xff]
      %v660 = vld [vmem:[%s5 + $0x1c8] sm:$0xff]
      %v661 = vld [vmem:[%s5 + $0x1d0] sm:$0xff]
      %v662 = vld [vmem:[%s5 + $0x1d8] sm:$0xff]
      %v663 = vld [vmem:[%s5 + $0x1e0] sm:$0xff]
      %v664 = vld [vmem:[%s5 + $0x1e8] sm:$0xff]
      %v665 = vld [vmem:[%s5 + $0x1f0] sm:$0xff]
      %v666 = vld [vmem:[%s5 + $0x1f8] sm:$0xff]
      %v667 = vld [vmem:[%s5 + $0x200] sm:$0xff]
      %v668 = vld [vmem:[%s5 + $0x208] sm:$0xff]
      %v669 = vld [vmem:[%s5 + $0x210] sm:$0xff]
      %v670 = vld [vmem:[%s5 + $0x218] sm:$0xff]
      %v671 = vld [vmem:[%s5 + $0x220] sm:$0xff]
      %v672 = vld [vmem:[%s5 + $0x228] sm:$0xff]
      %v673 = vld [vmem:[%s5 + $0x230] sm:$0xff]
      %v674 = vld [vmem:[%s5 + $0x238] sm:$0xff]
      %v675 = vld [vmem:[%s5 + $0x240] sm:$0xff]
      %v676 = vld [vmem:[%s5 + $0x248] sm:$0xff]
      %v677 = vld [vmem:[%s5 + $0x250] sm:$0xff]
      %v678 = vld [vmem:[%s5 + $0x258] sm:$0xff]
      %v679 = vld [vmem:[%s5 + $0x260] sm:$0xff]
      %v680 = vld [vmem:[%s5 + $0x268] sm:$0xff]
      %v681 = vld [vmem:[%s5 + $0x270] sm:$0xff]
      %v682 = vld [vmem:[%s5 + $0x278] sm:$0xff]
      %v683 = vld [vmem:[%s5 + $0x280] sm:$0xff]
      %v684 = vld [vmem:[%s5 + $0x288] sm:$0xff]
      %v685 = vld [vmem:[%s5 + $0x290] sm:$0xff]
      %v686 = vld [vmem:[%s5 + $0x298] sm:$0xff]
      %v687 = vld [vmem:[%s5 + $0x2a0] sm:$0xff]
      %v688 = vld [vmem:[%s5 + $0x2a8] sm:$0xff]
      %v689 = vld [vmem:[%s5 + $0x2b0] sm:$0xff]
      %v690 = vld [vmem:[%s5 + $0x2b8] sm:$0xff]
      %v691 = vld [vmem:[%s5 + $0x2c0] sm:$0xff]
      %v692 = vld [vmem:[%s5 + $0x2c8] sm:$0xff]
      %v693 = vld [vmem:[%s5 + $0x2d0] sm:$0xff]
      %v694 = vld [vmem:[%s5 + $0x2d8] sm:$0xff]
      %v695 = vld [vmem:[%s5 + $0x2e0] sm:$0xff]
      %v696 = vld [vmem:[%s5 + $0x2e8] sm:$0xff]
      %v697 = vld [vmem:[%s5 + $0x2f0] sm:$0xff]
      %v698 = vld [vmem:[%s5 + $0x2f8] sm:$0xff]
      %v699 = vld [vmem:[%s5 + $0x300] sm:$0xff]
      %v700 = vld [vmem:[%s5 + $0x308] sm:$0xff]
      %v701 = vld [vmem:[%s5 + $0x310] sm:$0xff]
      %v702 = vld [vmem:[%s5 + $0x318] sm:$0xff]
      %v703 = vld [vmem:[%s5 + $0x320] sm:$0xff]
      %v704 = vld [vmem:[%s5 + $0x328] sm:$0xff]
      %v705 = vld [vmem:[%s5 + $0x330] sm:$0xff]
      %v706 = vld [vmem:[%s5 + $0x338] sm:$0xff]
      %vm707 = vcmask 523264
      %v709 = vsel %vm707, %v587, 0
      %711 = vmatprep.subr.mxu0 0.0
      %712 = vmatpush1.msra.mxu0 0.0
      %713 = vmatprep.subr.mxu0 0.0
      %714 = vmatpush1.msra.mxu0 0.0
      %715 = vmatprep.subr.mxu0 0.0
      %716 = vmatpush1.msra.mxu0 0.0
      %717 = vmatprep.subr.mxu0 0.0
      %718 = vmatpush1.msra.mxu0 0.0
      %719 = vmatprep.subr.mxu0 0.0
      %720 = vmatpush1.msra.mxu0 0.0
      %721 = vmatprep.subr.mxu0 0.0
      %722 = vmatpush1.msra.mxu0 0.0
      %723 = vmatprep.subr.mxu0 0.0
      %724 = vmatpush1.msra.mxu0 0.0
      %725 = vmatprep.subr.mxu0 0.0
      %726 = vmatpush1.msra.mxu0 0.0
      %727 = vmatprep.subr.mxu0 %v695
      %728 = vmatpush1.msra.mxu0 %v694
      %729 = vmatprep.subr.mxu0 %v682
      %730 = vmatpush1.msra.mxu0 %v681
      %731 = vmatprep.subr.mxu0 %v669
      %732 = vmatpush1.msra.mxu0 %v668
      %733 = vmatprep.subr.mxu0 %v656
      %734 = vmatpush1.msra.mxu0 %v655
      %735 = vmatprep.subr.mxu0 %v643
      %736 = vmatpush1.msra.mxu0 %v642
      %737 = vmatprep.subr.mxu0 %v630
      %738 = vmatpush1.msra.mxu0 %v629
      %739 = vmatprep.subr.mxu0 %v617
      %740 = vmatpush1.msra.mxu0 %v616
      %741 = vmatprep.subr.mxu0 %v604
      %742 = vmatpush1.msra.mxu0 %v603
      %743 = vmatprep.subr.mxu0 0.0
      %744 = vmatpush2.msra.mxu0 0.0
      %745 = vmatprep.subr.mxu0 0.0
      %746 = vmatpush2.msra.mxu0 0.0
      %747 = vmatprep.subr.mxu0 0.0
      %748 = vmatpush2.msra.mxu0 0.0
      %749 = vmatprep.subr.mxu0 0.0
      %750 = vmatpush2.msra.mxu0 0.0
      %751 = vmatprep.subr.mxu0 0.0
      %752 = vmatpush2.msra.mxu0 0.0
      %753 = vmatprep.subr.mxu0 0.0
      %754 = vmatpush2.msra.mxu0 0.0
      %755 = vmatprep.subr.mxu0 0.0
      %756 = vmatpush2.msra.mxu0 0.0
      %757 = vmatprep.subr.mxu0 0.0
      %758 = vmatpush2.msra.mxu0 0.0
      %759 = vmatprep.subr.mxu0 0.0
      %760 = vmatpush2.msra.mxu0 0.0
      %761 = vmatprep.subr.mxu0 0.0
      %762 = vmatpush2.msra.mxu0 0.0
      %763 = vmatprep.subr.mxu0 0.0
      %764 = vmatpush2.msra.mxu0 0.0
      %765 = vmatprep.subr.mxu0 0.0
      %766 = vmatpush2.msra.mxu0 0.0
      %767 = vmatprep.subr.mxu0 0.0
      %768 = vmatpush2.msra.mxu0 0.0
      %769 = vmatprep.subr.mxu0 0.0
      %770 = vmatpush2.msra.mxu0 0.0
      %771 = vmatprep.subr.mxu0 0.0
      %772 = vmatpush2.msra.mxu0 0.0
      %773 = vmatprep.subr.mxu0 0.0
      %774 = vmatpush2.msra.mxu0 0.0
      %775 = vmatprep.mubr.f32.mxu0 0.0
      %776 = vmatmul.mubr.f32.gmra.mxu0 %v709
      %v777 = vpop.f32.mrf.mxu0
      %v778 = vadd.f32 0.0, %v777
      %v779 = vpop.f32.mrf.mxu0
      %v780 = vadd.f32 0.0, %v779
      %781 = vdwg.mxu0
      %782 = vmatprep.subr.mxu0 0.0
      %783 = vmatpush1.msra.mxu0 0.0
      %784 = vmatprep.subr.mxu0 0.0
      %785 = vmatpush1.msra.mxu0 0.0
      %786 = vmatprep.subr.mxu0 0.0
      %787 = vmatpush1.msra.mxu0 0.0
      %788 = vmatprep.subr.mxu0 0.0
      %789 = vmatpush1.msra.mxu0 0.0
      %790 = vmatprep.subr.mxu0 0.0
      %791 = vmatpush1.msra.mxu0 0.0
      %792 = vmatprep.subr.mxu0 0.0
      %793 = vmatpush1.msra.mxu0 0.0
      %794 = vmatprep.subr.mxu0 0.0
      %795 = vmatpush1.msra.mxu0 0.0
      %796 = vmatprep.subr.mxu0 0.0
      %797 = vmatpush1.msra.mxu0 0.0
      %798 = vmatprep.subr.mxu0 %v697
      %799 = vmatpush1.msra.mxu0 %v696
      %800 = vmatprep.subr.mxu0 %v684
      %801 = vmatpush1.msra.mxu0 %v683
      %802 = vmatprep.subr.mxu0 %v671
      %803 = vmatpush1.msra.mxu0 %v670
      %804 = vmatprep.subr.mxu0 %v658
      %805 = vmatpush1.msra.mxu0 %v657
      %806 = vmatprep.subr.mxu0 %v645
      %807 = vmatpush1.msra.mxu0 %v644
      %808 = vmatprep.subr.mxu0 %v632
      %809 = vmatpush1.msra.mxu0 %v631
      %810 = vmatprep.subr.mxu0 %v619
      %811 = vmatpush1.msra.mxu0 %v618
      %812 = vmatprep.subr.mxu0 %v606
      %813 = vmatpush1.msra.mxu0 %v605
      %814 = vmatprep.subr.mxu0 0.0
      %815 = vmatpush2.msra.mxu0 0.0
      %816 = vmatprep.subr.mxu0 0.0
      %817 = vmatpush2.msra.mxu0 0.0
      %818 = vmatprep.subr.mxu0 0.0
      %819 = vmatpush2.msra.mxu0 0.0
      %820 = vmatprep.subr.mxu0 0.0
      %821 = vmatpush2.msra.mxu0 0.0
      %822 = vmatprep.subr.mxu0 0.0
      %823 = vmatpush2.msra.mxu0 0.0
      %824 = vmatprep.subr.mxu0 0.0
      %825 = vmatpush2.msra.mxu0 0.0
      %826 = vmatprep.subr.mxu0 0.0
      %827 = vmatpush2.msra.mxu0 0.0
      %828 = vmatprep.subr.mxu0 0.0
      %829 = vmatpush2.msra.mxu0 0.0
      %830 = vmatprep.subr.mxu0 0.0
      %831 = vmatpush2.msra.mxu0 0.0
      %832 = vmatprep.subr.mxu0 0.0
      %833 = vmatpush2.msra.mxu0 0.0
      %834 = vmatprep.subr.mxu0 0.0
      %835 = vmatpush2.msra.mxu0 0.0
      %836 = vmatprep.subr.mxu0 0.0
      %837 = vmatpush2.msra.mxu0 0.0
      %838 = vmatprep.subr.mxu0 0.0
      %839 = vmatpush2.msra.mxu0 0.0
      %840 = vmatprep.subr.mxu0 0.0
      %841 = vmatpush2.msra.mxu0 0.0
      %842 = vmatprep.subr.mxu0 0.0
      %843 = vmatpush2.msra.mxu0 0.0
      %844 = vmatprep.subr.mxu0 0.0
      %845 = vmatpush2.msra.mxu0 0.0
      %846 = vmatprep.mubr.f32.mxu0 0.0
      %847 = vmatmul.mubr.f32.gmra.mxu0 %v709
      %v848 = vpop.f32.mrf.mxu0
      %v849 = vadd.f32 0.0, %v848
      %v850 = vpop.f32.mrf.mxu0
      %v851 = vadd.f32 0.0, %v850
      %852 = vdwg.mxu0
      %853 = vmatprep.subr.mxu0 0.0
      %854 = vmatpush1.msra.mxu0 0.0
      %855 = vmatprep.subr.mxu0 0.0
      %856 = vmatpush1.msra.mxu0 0.0
      %857 = vmatprep.subr.mxu0 0.0
      %858 = vmatpush1.msra.mxu0 0.0
      %859 = vmatprep.subr.mxu0 0.0
      %860 = vmatpush1.msra.mxu0 0.0
      %861 = vmatprep.subr.mxu0 0.0
      %862 = vmatpush1.msra.mxu0 0.0
      %863 = vmatprep.subr.mxu0 0.0
      %864 = vmatpush1.msra.mxu0 0.0
      %865 = vmatprep.subr.mxu0 0.0
      %866 = vmatpush1.msra.mxu0 0.0
      %867 = vmatprep.subr.mxu0 0.0
      %868 = vmatpush1.msra.mxu0 0.0
      %869 = vmatprep.subr.mxu0 %v699
      %870 = vmatpush1.msra.mxu0 %v698
      %871 = vmatprep.subr.mxu0 %v686
      %872 = vmatpush1.msra.mxu0 %v685
      %873 = vmatprep.subr.mxu0 %v673
      %874 = vmatpush1.msra.mxu0 %v672
      %875 = vmatprep.subr.mxu0 %v660
      %876 = vmatpush1.msra.mxu0 %v659
      %877 = vmatprep.subr.mxu0 %v647
      %878 = vmatpush1.msra.mxu0 %v646
      %879 = vmatprep.subr.mxu0 %v634
      %880 = vmatpush1.msra.mxu0 %v633
      %881 = vmatprep.subr.mxu0 %v621
      %882 = vmatpush1.msra.mxu0 %v620
      %883 = vmatprep.subr.mxu0 %v608
      %884 = vmatpush1.msra.mxu0 %v607
      %885 = vmatprep.subr.mxu0 0.0
      %886 = vmatpush2.msra.mxu0 0.0
      %887 = vmatprep.subr.mxu0 0.0
      %888 = vmatpush2.msra.mxu0 0.0
      %889 = vmatprep.subr.mxu0 0.0
      %890 = vmatpush2.msra.mxu0 0.0
      %891 = vmatprep.subr.mxu0 0.0
      %892 = vmatpush2.msra.mxu0 0.0
      %893 = vmatprep.subr.mxu0 0.0
      %894 = vmatpush2.msra.mxu0 0.0
      %895 = vmatprep.subr.mxu0 0.0
      %896 = vmatpush2.msra.mxu0 0.0
      %897 = vmatprep.subr.mxu0 0.0
      %898 = vmatpush2.msra.mxu0 0.0
      %899 = vmatprep.subr.mxu0 0.0
      %900 = vmatpush2.msra.mxu0 0.0
      %901 = vmatprep.subr.mxu0 0.0
      %902 = vmatpush2.msra.mxu0 0.0
      %903 = vmatprep.subr.mxu0 0.0
      %904 = vmatpush2.msra.mxu0 0.0
      %905 = vmatprep.subr.mxu0 0.0
      %906 = vmatpush2.msra.mxu0 0.0
      %907 = vmatprep.subr.mxu0 0.0
      %908 = vmatpush2.msra.mxu0 0.0
      %909 = vmatprep.subr.mxu0 0.0
      %910 = vmatpush2.msra.mxu0 0.0
      %911 = vmatprep.subr.mxu0 0.0
      %912 = vmatpush2.msra.mxu0 0.0
      %913 = vmatprep.subr.mxu0 0.0
      %914 = vmatpush2.msra.mxu0 0.0
      %915 = vmatprep.subr.mxu0 0.0
      %916 = vmatpush2.msra.mxu0 0.0
      %917 = vmatprep.mubr.f32.mxu0 0.0
      %918 = vmatmul.mubr.f32.gmra.mxu0 %v709
      %v919 = vpop.f32.mrf.mxu0
      %v920 = vadd.f32 0.0, %v919
      %v921 = vpop.f32.mrf.mxu0
      %v922 = vadd.f32 0.0, %v921
      %923 = vdwg.mxu0
      %924 = vmatprep.subr.mxu0 0.0
      %925 = vmatpush1.msra.mxu0 0.0
      %926 = vmatprep.subr.mxu0 0.0
      %927 = vmatpush1.msra.mxu0 0.0
      %928 = vmatprep.subr.mxu0 0.0
      %929 = vmatpush1.msra.mxu0 0.0
      %930 = vmatprep.subr.mxu0 0.0
      %931 = vmatpush1.msra.mxu0 0.0
      %932 = vmatprep.subr.mxu0 0.0
      %933 = vmatpush1.msra.mxu0 0.0
      %934 = vmatprep.subr.mxu0 0.0
      %935 = vmatpush1.msra.mxu0 0.0
      %936 = vmatprep.subr.mxu0 0.0
      %937 = vmatpush1.msra.mxu0 0.0
      %938 = vmatprep.subr.mxu0 0.0
      %939 = vmatpush1.msra.mxu0 0.0
      %940 = vmatprep.subr.mxu0 %v701
      %941 = vmatpush1.msra.mxu0 %v700
      %942 = vmatprep.subr.mxu0 %v688
      %943 = vmatpush1.msra.mxu0 %v687
      %944 = vmatprep.subr.mxu0 %v675
      %945 = vmatpush1.msra.mxu0 %v674
      %946 = vmatprep.subr.mxu0 %v662
      %947 = vmatpush1.msra.mxu0 %v661
      %948 = vmatprep.subr.mxu0 %v649
      %949 = vmatpush1.msra.mxu0 %v648
      %950 = vmatprep.subr.mxu0 %v636
      %951 = vmatpush1.msra.mxu0 %v635
      %952 = vmatprep.subr.mxu0 %v623
      %953 = vmatpush1.msra.mxu0 %v622
      %954 = vmatprep.subr.mxu0 %v610
      %955 = vmatpush1.msra.mxu0 %v609
      %956 = vmatprep.subr.mxu0 0.0
      %957 = vmatpush2.msra.mxu0 0.0
      %958 = vmatprep.subr.mxu0 0.0
      %959 = vmatpush2.msra.mxu0 0.0
      %960 = vmatprep.subr.mxu0 0.0
      %961 = vmatpush2.msra.mxu0 0.0
      %962 = vmatprep.subr.mxu0 0.0
      %963 = vmatpush2.msra.mxu0 0.0
      %964 = vmatprep.subr.mxu0 0.0
      %965 = vmatpush2.msra.mxu0 0.0
      %966 = vmatprep.subr.mxu0 0.0
      %967 = vmatpush2.msra.mxu0 0.0
      %968 = vmatprep.subr.mxu0 0.0
      %969 = vmatpush2.msra.mxu0 0.0
      %970 = vmatprep.subr.mxu0 0.0
      %971 = vmatpush2.msra.mxu0 0.0
      %972 = vmatprep.subr.mxu0 0.0
      %973 = vmatpush2.msra.mxu0 0.0
      %974 = vmatprep.subr.mxu0 0.0
      %975 = vmatpush2.msra.mxu0 0.0
      %976 = vmatprep.subr.mxu0 0.0
      %977 = vmatpush2.msra.mxu0 0.0
      %978 = vmatprep.subr.mxu0 0.0
      %979 = vmatpush2.msra.mxu0 0.0
      %980 = vmatprep.subr.mxu0 0.0
      %981 = vmatpush2.msra.mxu0 0.0
      %982 = vmatprep.subr.mxu0 0.0
      %983 = vmatpush2.msra.mxu0 0.0
      %984 = vmatprep.subr.mxu0 0.0
      %985 = vmatpush2.msra.mxu0 0.0
      %986 = vmatprep.subr.mxu0 0.0
      %987 = vmatpush2.msra.mxu0 0.0
      %988 = vmatprep.mubr.f32.mxu0 0.0
      %989 = vmatmul.mubr.f32.gmra.mxu0 %v709
      %v990 = vpop.f32.mrf.mxu0
      %v991 = vadd.f32 0.0, %v990
      %v992 = vpop.f32.mrf.mxu0
      %v993 = vadd.f32 0.0, %v992
      %994 = vdwg.mxu0
      %995 = vmatprep.subr.mxu0 0.0
      %996 = vmatpush1.msra.mxu0 0.0
      %997 = vmatprep.subr.mxu0 0.0
      %998 = vmatpush1.msra.mxu0 0.0
      %999 = vmatprep.subr.mxu0 0.0
      %1000 = vmatpush1.msra.mxu0 0.0
      %1001 = vmatprep.subr.mxu0 0.0
      %1002 = vmatpush1.msra.mxu0 0.0
      %1003 = vmatprep.subr.mxu0 0.0
      %1004 = vmatpush1.msra.mxu0 0.0
      %1005 = vmatprep.subr.mxu0 0.0
      %1006 = vmatpush1.msra.mxu0 0.0
      %1007 = vmatprep.subr.mxu0 0.0
      %1008 = vmatpush1.msra.mxu0 0.0
      %1009 = vmatprep.subr.mxu0 0.0
      %1010 = vmatpush1.msra.mxu0 0.0
      %1011 = vmatprep.subr.mxu0 %v703
      %1012 = vmatpush1.msra.mxu0 %v702
      %1013 = vmatprep.subr.mxu0 %v690
      %1014 = vmatpush1.msra.mxu0 %v689
      %1015 = vmatprep.subr.mxu0 %v677
      %1016 = vmatpush1.msra.mxu0 %v676
      %1017 = vmatprep.subr.mxu0 %v664
      %1018 = vmatpush1.msra.mxu0 %v663
      %1019 = vmatprep.subr.mxu0 %v651
      %1020 = vmatpush1.msra.mxu0 %v650
      %1021 = vmatprep.subr.mxu0 %v638
      %1022 = vmatpush1.msra.mxu0 %v637
      %1023 = vmatprep.subr.mxu0 %v625
      %1024 = vmatpush1.msra.mxu0 %v624
      %1025 = vmatprep.subr.mxu0 %v612
      %1026 = vmatpush1.msra.mxu0 %v611
      %1027 = vmatprep.subr.mxu0 0.0
      %1028 = vmatpush2.msra.mxu0 0.0
      %1029 = vmatprep.subr.mxu0 0.0
      %1030 = vmatpush2.msra.mxu0 0.0
      %1031 = vmatprep.subr.mxu0 0.0
      %1032 = vmatpush2.msra.mxu0 0.0
      %1033 = vmatprep.subr.mxu0 0.0
      %1034 = vmatpush2.msra.mxu0 0.0
      %1035 = vmatprep.subr.mxu0 0.0
      %1036 = vmatpush2.msra.mxu0 0.0
      %1037 = vmatprep.subr.mxu0 0.0
      %1038 = vmatpush2.msra.mxu0 0.0
      %1039 = vmatprep.subr.mxu0 0.0
      %1040 = vmatpush2.msra.mxu0 0.0
      %1041 = vmatprep.subr.mxu0 0.0
      %1042 = vmatpush2.msra.mxu0 0.0
      %1043 = vmatprep.subr.mxu0 0.0
      %1044 = vmatpush2.msra.mxu0 0.0
      %1045 = vmatprep.subr.mxu0 0.0
      %1046 = vmatpush2.msra.mxu0 0.0
      %1047 = vmatprep.subr.mxu0 0.0
      %1048 = vmatpush2.msra.mxu0 0.0
      %1049 = vmatprep.subr.mxu0 0.0
      %1050 = vmatpush2.msra.mxu0 0.0
      %1051 = vmatprep.subr.mxu0 0.0
      %1052 = vmatpush2.msra.mxu0 0.0
      %1053 = vmatprep.subr.mxu0 0.0
      %1054 = vmatpush2.msra.mxu0 0.0
      %1055 = vmatprep.subr.mxu0 0.0
      %1056 = vmatpush2.msra.mxu0 0.0
      %1057 = vmatprep.subr.mxu0 0.0
      %1058 = vmatpush2.msra.mxu0 0.0
      %1059 = vmatprep.mubr.f32.mxu0 0.0
      %1060 = vmatmul.mubr.f32.gmra.mxu0 %v709
      %v1061 = vpop.f32.mrf.mxu0
      %v1062 = vadd.f32 0.0, %v1061
      %v1063 = vpop.f32.mrf.mxu0
      %v1064 = vadd.f32 0.0, %v1063
      %1065 = vdwg.mxu0
      %1066 = vmatprep.subr.mxu0 0.0
      %1067 = vmatpush1.msra.mxu0 0.0
      %1068 = vmatprep.subr.mxu0 0.0
      %1069 = vmatpush1.msra.mxu0 0.0
      %1070 = vmatprep.subr.mxu0 0.0
      %1071 = vmatpush1.msra.mxu0 0.0
      %1072 = vmatprep.subr.mxu0 0.0
      %1073 = vmatpush1.msra.mxu0 0.0
      %1074 = vmatprep.subr.mxu0 0.0
      %1075 = vmatpush1.msra.mxu0 0.0
      %1076 = vmatprep.subr.mxu0 0.0
      %1077 = vmatpush1.msra.mxu0 0.0
      %1078 = vmatprep.subr.mxu0 0.0
      %1079 = vmatpush1.msra.mxu0 0.0
      %1080 = vmatprep.subr.mxu0 0.0
      %1081 = vmatpush1.msra.mxu0 0.0
      %1082 = vmatprep.subr.mxu0 %v705
      %1083 = vmatpush1.msra.mxu0 %v704
      %1084 = vmatprep.subr.mxu0 %v692
      %1085 = vmatpush1.msra.mxu0 %v691
      %1086 = vmatprep.subr.mxu0 %v679
      %1087 = vmatpush1.msra.mxu0 %v678
      %1088 = vmatprep.subr.mxu0 %v666
      %1089 = vmatpush1.msra.mxu0 %v665
      %1090 = vmatprep.subr.mxu0 %v653
      %1091 = vmatpush1.msra.mxu0 %v652
      %1092 = vmatprep.subr.mxu0 %v640
      %1093 = vmatpush1.msra.mxu0 %v639
      %1094 = vmatprep.subr.mxu0 %v627
      %1095 = vmatpush1.msra.mxu0 %v626
      %1096 = vmatprep.subr.mxu0 %v614
      %1097 = vmatpush1.msra.mxu0 %v613
      %1098 = vmatprep.subr.mxu0 0.0
      %1099 = vmatpush2.msra.mxu0 0.0
      %1100 = vmatprep.subr.mxu0 0.0
      %1101 = vmatpush2.msra.mxu0 0.0
      %1102 = vmatprep.subr.mxu0 0.0
      %1103 = vmatpush2.msra.mxu0 0.0
      %1104 = vmatprep.subr.mxu0 0.0
      %1105 = vmatpush2.msra.mxu0 0.0
      %1106 = vmatprep.subr.mxu0 0.0
      %1107 = vmatpush2.msra.mxu0 0.0
      %1108 = vmatprep.subr.mxu0 0.0
      %1109 = vmatpush2.msra.mxu0 0.0
      %1110 = vmatprep.subr.mxu0 0.0
      %1111 = vmatpush2.msra.mxu0 0.0
      %1112 = vmatprep.subr.mxu0 0.0
      %1113 = vmatpush2.msra.mxu0 0.0
      %1114 = vmatprep.subr.mxu0 0.0
      %1115 = vmatpush2.msra.mxu0 0.0
      %1116 = vmatprep.subr.mxu0 0.0
      %1117 = vmatpush2.msra.mxu0 0.0
      %1118 = vmatprep.subr.mxu0 0.0
      %1119 = vmatpush2.msra.mxu0 0.0
      %1120 = vmatprep.subr.mxu0 0.0
      %1121 = vmatpush2.msra.mxu0 0.0
      %1122 = vmatprep.subr.mxu0 0.0
      %1123 = vmatpush2.msra.mxu0 0.0
      %1124 = vmatprep.subr.mxu0 0.0
      %1125 = vmatpush2.msra.mxu0 0.0
      %1126 = vmatprep.subr.mxu0 0.0
      %1127 = vmatpush2.msra.mxu0 0.0
      %1128 = vmatprep.subr.mxu0 0.0
      %1129 = vmatpush2.msra.mxu0 0.0
      %1130 = vmatprep.mubr.f32.mxu0 0.0
      %1131 = vmatmul.mubr.f32.gmra.mxu0 %v709
      %v1132 = vpop.f32.mrf.mxu0
      %v1133 = vadd.f32 0.0, %v1132
      %v1134 = vpop.f32.mrf.mxu0
      %v1135 = vadd.f32 0.0, %v1134
      %1136 = vdwg.mxu0
      %1137 = vmatprep.subr.mxu0 0.0
      %1138 = vmatpush1.msra.mxu0 0.0
      %1139 = vmatprep.subr.mxu0 0.0
      %1140 = vmatpush1.msra.mxu0 0.0
      %1141 = vmatprep.subr.mxu0 0.0
      %1142 = vmatpush1.msra.mxu0 0.0
      %1143 = vmatprep.subr.mxu0 0.0
      %1144 = vmatpush1.msra.mxu0 0.0
      %1145 = vmatprep.subr.mxu0 0.0
      %1146 = vmatpush1.msra.mxu0 0.0
      %1147 = vmatprep.subr.mxu0 0.0
      %1148 = vmatpush1.msra.mxu0 0.0
      %1149 = vmatprep.subr.mxu0 0.0
      %1150 = vmatpush1.msra.mxu0 0.0
      %1151 = vmatprep.subr.mxu0 0.0
      %1152 = vmatpush1.msra.mxu0 0.0
      %1153 = vmatprep.subr.mxu0 0.0
      %1154 = vmatpush1.msra.mxu0 %v706
      %1155 = vmatprep.subr.mxu0 0.0
      %1156 = vmatpush1.msra.mxu0 %v693
      %1157 = vmatprep.subr.mxu0 0.0
      %1158 = vmatpush1.msra.mxu0 %v680
      %1159 = vmatprep.subr.mxu0 0.0
      %1160 = vmatpush1.msra.mxu0 %v667
      %1161 = vmatprep.subr.mxu0 0.0
      %1162 = vmatpush1.msra.mxu0 %v654
      %1163 = vmatprep.subr.mxu0 0.0
      %1164 = vmatpush1.msra.mxu0 %v641
      %1165 = vmatprep.subr.mxu0 0.0
      %1166 = vmatpush1.msra.mxu0 %v628
      %1167 = vmatprep.subr.mxu0 0.0
      %1168 = vmatpush1.msra.mxu0 %v615
      %1169 = vmatprep.subr.mxu0 0.0
      %1170 = vmatpush2.msra.mxu0 0.0
      %1171 = vmatprep.subr.mxu0 0.0
      %1172 = vmatpush2.msra.mxu0 0.0
      %1173 = vmatprep.subr.mxu0 0.0
      %1174 = vmatpush2.msra.mxu0 0.0
      %1175 = vmatprep.subr.mxu0 0.0
      %1176 = vmatpush2.msra.mxu0 0.0
      %1177 = vmatprep.subr.mxu0 0.0
      %1178 = vmatpush2.msra.mxu0 0.0
      %1179 = vmatprep.subr.mxu0 0.0
      %1180 = vmatpush2.msra.mxu0 0.0
      %1181 = vmatprep.subr.mxu0 0.0
      %1182 = vmatpush2.msra.mxu0 0.0
      %1183 = vmatprep.subr.mxu0 0.0
      %1184 = vmatpush2.msra.mxu0 0.0
      %1185 = vmatprep.subr.mxu0 0.0
      %1186 = vmatpush2.msra.mxu0 0.0
      %1187 = vmatprep.subr.mxu0 0.0
      %1188 = vmatpush2.msra.mxu0 0.0
      %1189 = vmatprep.subr.mxu0 0.0
      %1190 = vmatpush2.msra.mxu0 0.0
      %1191 = vmatprep.subr.mxu0 0.0
      %1192 = vmatpush2.msra.mxu0 0.0
      %1193 = vmatprep.subr.mxu0 0.0
      %1194 = vmatpush2.msra.mxu0 0.0
      %1195 = vmatprep.subr.mxu0 0.0
      %1196 = vmatpush2.msra.mxu0 0.0
      %1197 = vmatprep.subr.mxu0 0.0
      %1198 = vmatpush2.msra.mxu0 0.0
      %1199 = vmatprep.subr.mxu0 0.0
      %1200 = vmatpush2.msra.mxu0 0.0
      %1201 = vmatprep.mubr.f32.mxu0 0.0
      %1202 = vmatmul.mubr.f32.gmra.mxu0 %v709
      %v1203 = vpop.f32.mrf.mxu0
      %v1204 = vadd.f32 0.0, %v1203
      %v1205 = vpop.f32.mrf.mxu0
      %1206 = vdwg.mxu0
      %1207 = vst [vmem:[%s253] sm:$0xff] %v778
      %1208 = vst [vmem:[%s253 + $0x8] sm:$0xff] %v780
      %1209 = vst [vmem:[%s253 + $0x10] sm:$0xff] %v849
      %1210 = vst [vmem:[%s253 + $0x18] sm:$0xff] %v851
      %1211 = vst [vmem:[%s253 + $0x20] sm:$0xff] %v920
      %1212 = vst [vmem:[%s253 + $0x28] sm:$0xff] %v922
      %1213 = vst [vmem:[%s253 + $0x30] sm:$0xff] %v991
      %1214 = vst [vmem:[%s253 + $0x38] sm:$0xff] %v993
      %1215 = vst [vmem:[%s253 + $0x40] sm:$0xff] %v1062
      %1216 = vst [vmem:[%s253 + $0x48] sm:$0xff] %v1064
      %1217 = vst [vmem:[%s253 + $0x50] sm:$0xff] %v1133
      %1218 = vst [vmem:[%s253 + $0x58] sm:$0xff] %v1135
      %1219 = vst [vmem:[%s253 + $0x60] sm:$0xff] %v1204
      %p1220 = scmp.lt.s32.totalorder %s17, 1
      %s1221 = scalar_select %p1220, %s17, 1
      %s1222 = smul.addr %s1221, 13
      %s1223 = smul.addr %s1222, 8
      %s1224 = scalar_lea.vmem %s6, %s1223
      // Predicated region
      $region45: #{semantic_segmentor_forward.1} parent=43 // pred_check
        %p1225 = pneg %p166
      $region46: #{semantic_segmentor_forward.1} parent=43 // pred_check_branch
        %1227 = sbr.rel (%p1225) target = $region48
      $region47: #{semantic_segmentor_forward.1} parent=43 // pred_region
        _
      $region48: #{semantic_segmentor_forward.1} parent=43 // pred_fallthru
        _
    $region44: #{semantic_segmentor_forward.1} parent=5 // pred_fallthru
      _
    %p1228 = scmp.le.s32.totalorder 2, %s12
    // Predicated region
    $region49: #{semantic_segmentor_forward.1} parent=5 // pred_check
      %p1229 = pneg %p1228
    $region50: #{semantic_segmentor_forward.1} parent=5 // pred_check_branch
      %1231 = sbr.rel (%p1229) target = $region52
    $region51: #{semantic_segmentor_forward.1} parent=5 // pred_region
      %s1232 = ssub.s32 %s12, 2
      // Predicated region
      $region53: #{semantic_segmentor_forward.1} parent=51 // pred_check
        %p1233 = pneg %p172
      $region54: #{semantic_segmentor_forward.1} parent=51 // pred_check_branch
        %1235 = sbr.rel (%p1233) target = $region56
      $region55: #{semantic_segmentor_forward.1} parent=51 // pred_region
        %p1236 = scmp.lt.s32.totalorder %s18, 1
        %s1237 = scalar_select %p1236, %s18, 1
        %s1238 = smul.addr %s1237, 13
        %s1239 = smul.addr %s1238, 8
        %s1240 = scalar_lea.vmem %s6, %s1239
      $region56: #{semantic_segmentor_forward.1} parent=51 // pred_fallthru
        _
    $region52: #{semantic_segmentor_forward.1} parent=5 // pred_fallthru
      _
  $region6: #{semantic_segmentor_forward.1} parent=0 // loop_footer
    %s16 = sadd.s32 1, %s12
  $region7: #{semantic_segmentor_forward.1} parent=0 // loop_footer_branch
    %11 = sbr.rel target = $region3
  $region8: #{semantic_segmentor_forward.1} parent=0 // loop_exit
    _

</llo_original>
